<compile_context>
chip_gen: v7x
topology: tpu7x:2x2x1
jax: 0.10.0
libtpu: 0.0.40
codegen_flags: <defaults>
</compile_context>

<pallas_src>
import functools

import jax
import jax.numpy as jnp
from jax.experimental import pallas as pl
from jax.experimental.pallas import tpu as pltpu


def _adapter_kernel(x_ref, w1_ref, w2_ref, o_ref, *, ratio):
    # x tile: [TN, C]; normalize / ReLU / mix in f32 on the VPU, matmuls on
    # the MXU with bf16 inputs and f32 accumulation.
    x = x_ref[...].astype(jnp.float32)

    # F.normalize(x, dim=-1, p=2): x / max(||x||_2, 1e-12)
    # == x * rsqrt(max(||x||_2^2, 1e-24))  (single EUP rsqrt, no divide)
    sq = jnp.sum(x * x, axis=-1, keepdims=True)
    inv = jax.lax.rsqrt(jnp.maximum(sq, 1e-24))

    # Keep only inv ([TN,1]) and the bf16 normalized tile live across the
    # matmuls (no f32 [TN,C] xn buffer in the per-step working set).
    xn_bf = (x * inv).astype(jnp.bfloat16)

    # Weights are bf16 and VMEM-resident (constant index_map): no in-kernel cast.
    h = jnp.dot(xn_bf, w1_ref[...],
                preferred_element_type=jnp.float32)        # MXU: [TN, Hp]
    h = jnp.maximum(h, 0.0)                                # ReLU
    # Dropout(0.5) -> identity in eval mode.
    y = jnp.dot(h.astype(jnp.bfloat16), w2_ref[...],
                preferred_element_type=jnp.float32)        # MXU: [TN, C]
    y = jnp.maximum(y, 0.0)                                # ReLU

    # Fused epilogue: recompute the f32 residual from the VMEM-resident x tile
    # (cheap VMEM re-read) and do a single lane-dense store.
    res = x_ref[...].astype(jnp.float32) * inv
    o_ref[...] = (ratio * y + (1.0 - ratio) * res).astype(o_ref.dtype)


def _round_up(a, b):
    return (a + b - 1) // b * b


def _sublane_multiple(dtype):
    # Packed sublanes per vreg row-group: f32 -> 8, bf16 -> 16, int8/fp8 -> 32.
    return 8 * max(1, 4 // jnp.dtype(dtype).itemsize)


def modified_clip_adapter(x, w1, w2, *, ratio=0.6, block_rows=1024,
                          out_dtype=None):
    """x: [..., c_in]; w1: [c_in, c_in//r]; w2: [c_in//r, c_in]."""
    orig_shape = x.shape
    c_in = orig_shape[-1]
    hidden = w1.shape[1]
    out_dtype = x.dtype if out_dtype is None else jnp.dtype(out_dtype)

    x2d = x.reshape(-1, c_in)                    # [N, C] (glue reshape)
    n = x2d.shape[0]

    # Zero-pad hidden to a lane-dense multiple of 128; zeros are preserved
    # through the ReLU and contribute nothing through w2 -> identical result.
    hp = _round_up(hidden, 128)
    w1_bf = w1.astype(jnp.bfloat16)
    w2_bf = w2.astype(jnp.bfloat16)
    if hp != hidden:
        w1_bf = jnp.pad(w1_bf, ((0, 0), (0, hp - hidden)))
        w2_bf = jnp.pad(w2_bf, ((0, hp - hidden), (0, 0)))

    # Row tile: multiple of the sublane packing of both input and output dtypes.
    base = max(_sublane_multiple(x.dtype), _sublane_multiple(out_dtype))
    tn = max(base, min(_round_up(block_rows, base), _round_up(n, base)))
    # Guarantee >= 2 grid steps when possible so both v7x TensorCores get rows
    # (neutral on single-TC v5e/v6e).
    if pl.cdiv(n, tn) < 2 and n > base:
        tn = _round_up(pl.cdiv(n, 2), base)

    # Generation-aware VMEM budget (v5e/v6e: 128 MiB, v7x: 64 MiB per TC).
    try:
        vmem_cap = int(pltpu.get_tpu_info().vmem_capacity_bytes)
    except Exception:
        vmem_cap = 64 << 20                       # conservative (v7x per-TC)
    vmem_budget = (vmem_cap * 3) // 4

    in_isz = jnp.dtype(x.dtype).itemsize
    out_isz = jnp.dtype(out_dtype).itemsize
    weight_bytes = (w1_bf.size + w2_bf.size) * 2  # bf16

    def _need(t):
        io = 2 * t * c_in * in_isz + 2 * t * c_in * out_isz   # dbl-buffered x/out
        interm = t * (2 * c_in + 2 * hp) * 4                  # f32/bf16 temps
        return io + 2 * weight_bytes + interm + (4 << 20)     # + slack

    while _need(tn) > vmem_budget and tn > base:
        tn = max(base, _round_up(tn // 2, base))
    vmem_limit = int(max(min(_need(tn), vmem_budget), 16 << 20))

    # No jnp.pad: non-divisible grids leave the last block implicitly masked on
    # store (garbage rows are never written back, no cross-row mixing).
    grid = (pl.cdiv(n, tn),)

    cost = pl.CostEstimate(
        flops=int(4 * n * c_in * hp),                     # two matmuls
        transcendentals=int(n),                           # one rsqrt per row
        bytes_accessed=int(n * c_in * (in_isz + out_isz) + weight_bytes),
    )

    kernel = functools.partial(_adapter_kernel, ratio=float(ratio))

    out2d = pl.pallas_call(
        kernel,
        out_shape=jax.ShapeDtypeStruct((n, c_in), out_dtype),
        grid_spec=pltpu.PrefetchScalarGridSpec(
            num_scalar_prefetch=0,
            grid=grid,
            in_specs=[
                # Row-tiled activations: block index advances with the grid.
                pl.BlockSpec((tn, c_in), lambda i: (i, 0)),
                # Weights: constant block index -> VMEM-resident across the grid.
                pl.BlockSpec(w1_bf.shape, lambda i: (0, 0)),
                pl.BlockSpec(w2_bf.shape, lambda i: (0, 0)),
            ],
            out_specs=pl.BlockSpec((tn, c_in), lambda i: (i, 0)),
        ),
        compiler_params=pltpu.CompilerParams(
            dimension_semantics=("parallel",),   # no reduction axis
            vmem_limit_bytes=vmem_limit,
        ),
        cost_estimate=cost,
    )(x2d, w1_bf, w2_bf)

    return out2d.reshape(orig_shape)


def _reference(x, w1, w2, ratio=0.6):
    xn = x / jnp.maximum(jnp.linalg.norm(x, axis=-1, keepdims=True), 1e-12)
    h = jnp.maximum(xn @ w1, 0.0)
    y = jnp.maximum(h @ w2, 0.0)
    return ratio * y + (1 - ratio) * xn


if __name__ == "__main__":
    # Small shapes consistent with the module: batch=2, seq=8, c_in=32,
    # reduction=4 -> hidden=8.
    batch, seq, c_in, reduction = 2, 8, 32, 4
    hidden = c_in // reduction
    ratio = 0.6

    key = jax.random.PRNGKey(0)
    kx, k1, k2 = jax.random.split(key, 3)

    x = jax.random.normal(kx, (batch, seq, c_in), dtype=jnp.float32)
    # Deterministic synthetic weights (nn.Linear-like scale, no bias).
    w1 = jax.random.uniform(
        k1, (c_in, hidden), dtype=jnp.float32,
        minval=-1.0 / (c_in ** 0.5), maxval=1.0 / (c_in ** 0.5))
    w2 = jax.random.uniform(
        k2, (hidden, c_in), dtype=jnp.float32,
        minval=-1.0 / (hidden ** 0.5), maxval=1.0 / (hidden ** 0.5))

    out = modified_clip_adapter(x, w1, w2, ratio=ratio)
    out = jax.block_until_ready(out)

    ref = _reference(x, w1, w2, ratio=ratio)
    assert out.shape == x.shape
    # bf16 MXU inputs (f32 accumulation) -> tolerance loosened vs. pure f32.
    assert jnp.allclose(out, ref, atol=1e-2, rtol=1e-2), "mismatch vs reference"

    print("KERNEL_OK")
</pallas_src>

<mosaic_0001>
module attributes {stable_mosaic.version = 11 : i64} {
  func.func @_adapter_kernel(%arg0: i32, %arg1: memref<8x32xf32, #tpu.memory_space<vmem>>, %arg2: memref<32x128xbf16, #tpu.memory_space<vmem>>, %arg3: memref<128x32xbf16, #tpu.memory_space<vmem>>, %arg4: memref<8x32xf32, #tpu.memory_space<vmem>>) attributes {dimension_semantics = [#tpu.dimension_semantics<parallel>], iteration_bounds = array<i64: 2>, scalar_prefetch = 0 : i64, scratch_operands = 0 : i64, tpu.core_type = #tpu.core_type<tc>, window_params = [{transform_indices = @transform_0, window_bounds = array<i64: 8, 32>}, {pipeline_mode = #tpu.pipeline_mode<synchronous>, transform_indices = @transform_1, window_bounds = array<i64: 32, 128>}, {pipeline_mode = #tpu.pipeline_mode<synchronous>, transform_indices = @transform_2, window_bounds = array<i64: 128, 32>}, {transform_indices = @transform_3, window_bounds = array<i64: 8, 32>}]} {
    %c0 = arith.constant 0 : index
    %c0_0 = arith.constant 0 : index
    %0 = vector.load %arg1[%c0, %c0_0] : memref<8x32xf32, #tpu.memory_space<vmem>>, vector<8x32xf32>
    %1 = arith.mulf %0, %0 : vector<8x32xf32>
    %cst = arith.constant dense<0.000000e+00> : vector<8xf32>
    %2 = vector.multi_reduction <add>, %1, %cst [1] : vector<8x32xf32> to vector<8xf32>
    %3 = vector.shape_cast %2 : vector<8xf32> to vector<8x1xf32>
    %cst_1 = arith.constant 1.000000e-24 : f32
    %4 = vector.broadcast %cst_1 : f32 to vector<8x1xf32>
    %5 = arith.maximumf %3, %4 : vector<8x1xf32>
    %6 = math.rsqrt %5 : vector<8x1xf32>
    %7 = vector.broadcast %6 : vector<8x1xf32> to vector<8x32xf32>
    %8 = arith.mulf %0, %7 : vector<8x32xf32>
    %9 = arith.truncf %8 : vector<8x32xf32> to vector<8x32xbf16>
    %c0_2 = arith.constant 0 : index
    %c0_3 = arith.constant 0 : index
    %10 = vector.load %arg2[%c0_2, %c0_3] : memref<32x128xbf16, #tpu.memory_space<vmem>>, vector<32x128xbf16>
    %cst_4 = arith.constant dense<0.000000e+00> : vector<8x128xf32>
    %11 = tpu.matmul %9, %10, %cst_4 {dimension_numbers = #tpu.dot_dimension_numbers<[1], [0], [0], [1], [0, 0, 1, 1], [], []>} : vector<8x32xbf16>, vector<32x128xbf16>, vector<8x128xf32> -> vector<8x128xf32>
    %cst_5 = arith.constant 0.000000e+00 : f32
    %12 = vector.broadcast %cst_5 : f32 to vector<8x128xf32>
    %13 = arith.maximumf %11, %12 : vector<8x128xf32>
    %14 = arith.truncf %13 : vector<8x128xf32> to vector<8x128xbf16>
    %c0_6 = arith.constant 0 : index
    %c0_7 = arith.constant 0 : index
    %15 = vector.load %arg3[%c0_6, %c0_7] : memref<128x32xbf16, #tpu.memory_space<vmem>>, vector<128x32xbf16>
    %cst_8 = arith.constant dense<0.000000e+00> : vector<8x32xf32>
    %16 = tpu.matmul %14, %15, %cst_8 {dimension_numbers = #tpu.dot_dimension_numbers<[1], [0], [0], [1], [0, 0, 1, 1], [], []>} : vector<8x128xbf16>, vector<128x32xbf16>, vector<8x32xf32> -> vector<8x32xf32>
    %cst_9 = arith.constant 0.000000e+00 : f32
    %17 = vector.broadcast %cst_9 : f32 to vector<8x32xf32>
    %18 = arith.maximumf %16, %17 : vector<8x32xf32>
    %c0_10 = arith.constant 0 : index
    %c0_11 = arith.constant 0 : index
    %19 = vector.load %arg1[%c0_10, %c0_11] : memref<8x32xf32, #tpu.memory_space<vmem>>, vector<8x32xf32>
    %20 = vector.broadcast %6 : vector<8x1xf32> to vector<8x32xf32>
    %21 = arith.mulf %19, %20 : vector<8x32xf32>
    %cst_12 = arith.constant 6.000000e-01 : f32
    %22 = vector.broadcast %cst_12 : f32 to vector<8x32xf32>
    %23 = arith.mulf %22, %18 : vector<8x32xf32>
    %cst_13 = arith.constant 4.000000e-01 : f32
    %24 = vector.broadcast %cst_13 : f32 to vector<8x32xf32>
    %25 = arith.mulf %24, %21 : vector<8x32xf32>
    %26 = arith.addf %23, %25 : vector<8x32xf32>
    %c0_14 = arith.constant 0 : index
    %c0_15 = arith.constant 0 : index
    %27 = vector.load %arg4[%c0_14, %c0_15] : memref<8x32xf32, #tpu.memory_space<vmem>>, vector<8x32xf32>
    tpu.vector_store %arg4[%c0_14, %c0_15], %26 {strides = array<i32>} : memref<8x32xf32, #tpu.memory_space<vmem>>, vector<8x32xf32>,
    return
  }
  func.func @transform_0(%arg0: i32) -> (i32, i32) {
    %c0_i32 = arith.constant 0 : i32
    %c0_i32_0 = arith.constant 0 : i32
    return %arg0, %c0_i32 : i32, i32
  }
  func.func @transform_1(%arg0: i32) -> (i32, i32) {
    %c0_i32 = arith.constant 0 : i32
    %c0_i32_0 = arith.constant 0 : i32
    %c0_i32_1 = arith.constant 0 : i32
    return %c0_i32, %c0_i32_0 : i32, i32
  }
  func.func @transform_2(%arg0: i32) -> (i32, i32) {
    %c0_i32 = arith.constant 0 : i32
    %c0_i32_0 = arith.constant 0 : i32
    %c0_i32_1 = arith.constant 0 : i32
    return %c0_i32, %c0_i32_0 : i32, i32
  }
  func.func @transform_3(%arg0: i32) -> (i32, i32) {
    %c0_i32 = arith.constant 0 : i32
    %c0_i32_0 = arith.constant 0 : i32
    return %arg0, %c0_i32 : i32, i32
  }
}

</mosaic_0001>

<llo_original>
// kernel: tpu_custom_call.1
$region0: #{tpu_custom_call.1}
  #allocation0 [shape = 'u32[]', space=smem, size = 0x4, offset = 0x4, fixed_abs, tag = 'smem constant byte address 0x4 - core index']
  #allocation1 [shape = 'u32[144,128]{1,0:T(1,128)}', space=vmem, size = 0x12000, scoped, tag = 'internal scratch']
  %s0 = inlined_call_operand.vmem [shape: f32[16,32], index: 0, kind: input, shape index: {}]
  %s1 = inlined_call_operand.vmem [shape: bf16[32,128], index: 1, kind: input, shape index: {}]
  %s2 = inlined_call_operand.vmem [shape: bf16[128,32], index: 2, kind: input, shape index: {}]
  %s3 = inlined_call_operand.hbm [shape: f32[16,32], index: 3, kind: output, shape index: {}]
  %s4 = sld [smem:[#allocation0]]
  $region45: #{tpu_custom_call.1} parent=0
    _
  %s6 = ssub.s32 1, %s4
  %s7 = scalar_select 0, %s6, %s4
  $region1: #{tpu_custom_call.1} parent=0
    #allocation2 [shape = 'u8[8192]{0}', space=vmem, size = 0x2000, scoped, tag = 'output window, operand 0']
    #allocation3 [shape = 's32[2]{0}', space=sflag, size = 0x8, scoped, tag = 'scoped memory for tpu_custom_call.1']
    %8 = vsyncpa [#allocation3], 0
    %s9 = scalar_lea.sflag [#allocation3], 1
    %10 = vsyncpa %s9, 0
    loop: start=0, step=1, limit=4
    $region2: #{tpu_custom_call.1} parent=1 // loop_pre_header
      _
    $region3: #{tpu_custom_call.1} parent=1 // loop_header
      %s12 = sphi 0, %s16
      %p13 = scmp.ge.s32.totalorder %s12, 4
      %s22 = sphi 0, %s24
      %s25 = sphi 0, %s22
      %s26 = sphi 0, %s25
      %s42 = sphi 0, %s26
      %s46 = sphi 0, %s46
      %s48 = sphi 0, %s46
      %s49 = sphi 0, %s48
      %s63 = sphi 0, %s49
      %s67 = sphi 0, %s67
      %s69 = sphi 0, %s67
      %s70 = sphi 0, %s69
      %s84 = sphi 0, %s70
      %s90 = sphi 0, %s92
      %s93 = sphi 0, %s90
      %s94 = sphi 0, %s93
      %s110 = sphi 0, %s94
    $region4: #{tpu_custom_call.1} parent=1 // loop_header_branch
      %15 = sbr.rel (%p13) target = $region8
    $region5: #{tpu_custom_call.1} parent=1 // loop_body
      %s17 = ssub.s32 %s12, 1
      %s18 = ssub.s32 %s12, 2
      %s19 = sadd.s32 %s12, 1
      %s20 = ssub.s32 %s12, %s19
      %p21 = scmp.eq.s32.totalorder %s20, 0
      %s23 = sadd.s32 %s22, 1
      %s24 = scalar_select %p21, %s22, %s23
      %p27 = pneg %p21
      %p28 = scmp.eq.s32.totalorder %s12, 1
      %p29 = por %p27, %p28
      %p30 = scmp.ne.s32.totalorder %s22, %s25
      %p31 = scmp.eq.s32.totalorder %s12, 0
      %p32 = por %p30, %p31
      %p33 = scmp.ne.s32.totalorder %s22, %s25
      %p34 = scmp.eq.s32.totalorder %s17, 1
      %p35 = por %p33, %p34
      %p36 = scmp.ne.s32.totalorder %s25, %s26
      %p37 = scmp.eq.s32.totalorder %s17, 0
      %p38 = por %p36, %p37
      %p39 = scmp.ne.s32.totalorder %s25, %s26
      %p40 = scmp.eq.s32.totalorder %s18, 1
      %p41 = por %p39, %p40
      %p43 = scmp.ne.s32.totalorder %s26, %s42
      %p44 = scmp.eq.s32.totalorder %s18, 0
      %p45 = por %p43, %p44
      %s47 = sadd.s32 %s46, 1
      %p50 = scmp.eq.s32.totalorder %s12, 1
      %p51 = scmp.ne.s32.totalorder %s46, %s48
      %p52 = scmp.eq.s32.totalorder %s12, 0
      %p53 = por %p51, %p52
      %p54 = scmp.ne.s32.totalorder %s46, %s48
      %p55 = scmp.eq.s32.totalorder %s17, 1
      %p56 = por %p54, %p55
      %p57 = scmp.ne.s32.totalorder %s48, %s49
      %p58 = scmp.eq.s32.totalorder %s17, 0
      %p59 = por %p57, %p58
      %p60 = scmp.ne.s32.totalorder %s48, %s49
      %p61 = scmp.eq.s32.totalorder %s18, 1
      %p62 = por %p60, %p61
      %p64 = scmp.ne.s32.totalorder %s49, %s63
      %p65 = scmp.eq.s32.totalorder %s18, 0
      %p66 = por %p64, %p65
      %s68 = sadd.s32 %s67, 1
      %p71 = scmp.eq.s32.totalorder %s12, 1
      %p72 = scmp.ne.s32.totalorder %s67, %s69
      %p73 = scmp.eq.s32.totalorder %s12, 0
      %p74 = por %p72, %p73
      %p75 = scmp.ne.s32.totalorder %s67, %s69
      %p76 = scmp.eq.s32.totalorder %s17, 1
      %p77 = por %p75, %p76
      %p78 = scmp.ne.s32.totalorder %s69, %s70
      %p79 = scmp.eq.s32.totalorder %s17, 0
      %p80 = por %p78, %p79
      %p81 = scmp.ne.s32.totalorder %s69, %s70
      %p82 = scmp.eq.s32.totalorder %s18, 1
      %p83 = por %p81, %p82
      %p85 = scmp.ne.s32.totalorder %s70, %s84
      %p86 = scmp.eq.s32.totalorder %s18, 0
      %p87 = por %p85, %p86
      %s88 = ssub.s32 %s12, %s19
      %p89 = scmp.eq.s32.totalorder %s88, 0
      %s91 = sadd.s32 %s90, 1
      %s92 = scalar_select %p89, %s90, %s91
      %p95 = pneg %p89
      %p96 = scmp.eq.s32.totalorder %s12, 1
      %p97 = por %p95, %p96
      %p98 = scmp.ne.s32.totalorder %s90, %s93
      %p99 = scmp.eq.s32.totalorder %s12, 0
      %p100 = por %p98, %p99
      %p101 = scmp.ne.s32.totalorder %s90, %s93
      %p102 = scmp.eq.s32.totalorder %s17, 1
      %p103 = por %p101, %p102
      %p104 = scmp.ne.s32.totalorder %s93, %s94
      %p105 = scmp.eq.s32.totalorder %s17, 0
      %p106 = por %p104, %p105
      %p107 = scmp.ne.s32.totalorder %s93, %s94
      %p108 = scmp.eq.s32.totalorder %s18, 1
      %p109 = por %p107, %p108
      %p111 = scmp.ne.s32.totalorder %s94, %s110
      %p112 = scmp.eq.s32.totalorder %s18, 0
      %p113 = por %p111, %p112
      %p114 = scmp.le.s32.totalorder 1, %s12
      %p115 = scmp.lt.s32.totalorder %s12, 3
      %p116 = pnand %p114, %p115
      %p117 = pneg %p116
      // Predicated region
      $region9: #{tpu_custom_call.1} parent=5 // pred_check
        _
      $region10: #{tpu_custom_call.1} parent=5 // pred_check_branch
        %119 = sbr.rel (%p116) target = $region12
      $region11: #{tpu_custom_call.1} parent=5 // pred_region
        %s120 = ssub.s32 %s12, 1
        // Predicated region
        $region13: #{tpu_custom_call.1} parent=11 // pred_check
          %p121 = pneg %p59
        $region14: #{tpu_custom_call.1} parent=11 // pred_check_branch
          %123 = sbr.rel (%p121) target = $region16
        $region15: #{tpu_custom_call.1} parent=11 // pred_region
          _
        $region16: #{tpu_custom_call.1} parent=11 // pred_fallthru
          _
        // Predicated region
        $region17: #{tpu_custom_call.1} parent=11 // pred_check
          %p124 = pneg %p80
        $region18: #{tpu_custom_call.1} parent=11 // pred_check_branch
          %126 = sbr.rel (%p124) target = $region20
        $region19: #{tpu_custom_call.1} parent=11 // pred_region
          _
        $region20: #{tpu_custom_call.1} parent=11 // pred_fallthru
          _
      $region12: #{tpu_custom_call.1} parent=5 // pred_fallthru
        _
      %p127 = scmp.lt.s32.totalorder %s12, 2
      // Predicated region
      $region21: #{tpu_custom_call.1} parent=5 // pred_check
        %p128 = pneg %p127
      $region22: #{tpu_custom_call.1} parent=5 // pred_check_branch
        %130 = sbr.rel (%p128) target = $region24
      $region23: #{tpu_custom_call.1} parent=5 // pred_region
        // Predicated region
        $region25: #{tpu_custom_call.1} parent=23 // pred_check
          %p131 = pneg %p32
        $region26: #{tpu_custom_call.1} parent=23 // pred_check_branch
          %133 = sbr.rel (%p131) target = $region28
        $region27: #{tpu_custom_call.1} parent=23 // pred_region
          %p134 = scmp.lt.s32.totalorder %s12, 1
          %s135 = scalar_select %p134, %s12, 1
          %s136 = smul.addr %s135, 8
          %s137 = scalar_lea.vmem %s0, %s136
        $region28: #{tpu_custom_call.1} parent=23 // pred_fallthru
          _
      $region24: #{tpu_custom_call.1} parent=5 // pred_fallthru
        _
      %p138 = scmp.le.s32.totalorder 1, %s12
      %p139 = scmp.lt.s32.totalorder %s12, 3
      %p140 = pnand %p138, %p139
      %p141 = pneg %p140
      // Predicated region
      $region29: #{tpu_custom_call.1} parent=5 // pred_check
        _
      $region30: #{tpu_custom_call.1} parent=5 // pred_check_branch
        %143 = sbr.rel (%p140) target = $region32
      $region31: #{tpu_custom_call.1} parent=5 // pred_region
        %s144 = ssub.s32 %s12, 1
        %p145 = scmp.lt.s32.totalorder %s17, 1
        %s146 = scalar_select %p145, %s17, 1
        %s147 = smul.addr %s146, 8
        %s148 = scalar_lea.vmem %s0, %s147
        %p149 = pneg %p38
        %p150 = pneg %p35
        %p151 = pneg %p59
        %p152 = pneg %p56
        %p153 = pneg %p80
        %p154 = pneg %p77
        %p155 = pneg %p106
        %p156 = pneg %p103
        %s157 = sand.u32 %s93, 1
        %s158 = scalar_lea.sflag [#allocation3], %s157
        %s159 = sand.u32 %s93, 1
        %s160 = smul.addr %s159, 8
        %s161 = scalar_lea.vmem [#allocation2], %s160
        %p162 = scmp.lt.s32.totalorder %s17, 1
        %s163 = scalar_select %p162, %s17, 1
        %s164 = smul.addr %s163, 8
        %s165 = scalar_lea.vmem %s0, %s164
        %v167 = vld [vmem:[%s165] sm:$0xff]
        %v168 = vmul.f32 %v167, %v167
        %vm169 = vcmask 261120
        %v170 = vsel %vm169, %v168, 0.0
        %171 = vadd.xlane.f32.xlu0 %v170
        %v172 = vpop.xlane.xlu0 %171
        %v173 = vmax.f32 %v172, 1e-24
        %v174 = vrsqrt.pop %v173
        %v175 = vmul.f32 %v167, %v174
        %v176 = vpack.c.bf16 %v175, %v175
        %v177 = vld [vmem:[%s1] sm:$0xf]
        %v178 = vld [vmem:[%s1 + $0x4] sm:$0xf]
        %v179 = vld [vmem:[%s1 + $0x8] sm:$0xf]
        %v180 = vld [vmem:[%s1 + $0xc] sm:$0xf]
        %v185 = vunpack.c.l.b16 %v177
        %v186 = vunpack.c.l.b16 %v178
        %v187 = vunpack.c.l.b16 %v179
        %v188 = vunpack.c.l.b16 %v180
        %v189 = vpack.c.b16 %v186, %v185
        %v190 = vpack.c.b16 %v188, %v187
        %v194 = vsel %vm169, %v176, 0
        %196 = vmatprep.subr.bf16.mxu0 0
        %197 = vmatpush1.bf16.msra.mxu0 %v189
        %198 = vmatprep.subr.bf16.mxu0 0
        %199 = vmatpush1.bf16.msra.mxu0 %v190
        %200 = vmatprep.subr.bf16.mxu0 0
        %201 = vmatpush1.bf16.msra.mxu0 0
        %202 = vmatprep.subr.bf16.mxu0 0
        %203 = vmatpush1.bf16.msra.mxu0 0
        %204 = vmatprep.subr.bf16.mxu0 0
        %205 = vmatpush1.bf16.msra.mxu0 0
        %206 = vmatprep.subr.bf16.mxu0 0
        %207 = vmatpush1.bf16.msra.mxu0 0
        %208 = vmatprep.subr.bf16.mxu0 0
        %209 = vmatpush1.bf16.msra.mxu0 0
        %210 = vmatprep.subr.bf16.mxu0 0
        %211 = vmatpush1.bf16.msra.mxu0 0
        %212 = vmatprep.subr.bf16.mxu0 0
        %213 = vmatpush1.bf16.msra.mxu0 0
        %214 = vmatprep.subr.bf16.mxu0 0
        %215 = vmatpush1.bf16.msra.mxu0 0
        %216 = vmatprep.subr.bf16.mxu0 0
        %217 = vmatpush1.bf16.msra.mxu0 0
        %218 = vmatprep.subr.bf16.mxu0 0
        %219 = vmatpush1.bf16.msra.mxu0 0
        %220 = vmatprep.subr.bf16.mxu0 0
        %221 = vmatpush1.bf16.msra.mxu0 0
        %222 = vmatprep.subr.bf16.mxu0 0
        %223 = vmatpush1.bf16.msra.mxu0 0
        %224 = vmatprep.subr.bf16.mxu0 0
        %225 = vmatpush1.bf16.msra.mxu0 0
        %226 = vmatprep.subr.bf16.mxu0 0
        %227 = vmatpush1.bf16.msra.mxu0 0
        %228 = vmatprep.mubr.bf16.mxu0 0
        %229 = vmatmul.mubr.bf16.gmra.mrb[0].mxu0 %v194
        %v230 = vpop.f32.mrb[0].mxu0
        %v231 = vadd.f32 0.0, %v230
        %v232 = vpop.f32.mrb[0].mxu0
        %v233 = vpop.f32.mrb[0].mxu0
        %v234 = vpop.f32.mrb[0].mxu0
        %235 = vdwg.mxu0
        %v236 = vmax.f32 %v231, 0.0
        %v237 = vpack.c.bf16 %v236, %v236
        %v238 = vld [vmem:[%s2] sm:$0xf]
        %v239 = vld [vmem:[%s2 + $0x4] sm:$0xf]
        %v240 = vld [vmem:[%s2 + $0x8] sm:$0xf]
        %v241 = vld [vmem:[%s2 + $0xc] sm:$0xf]
        %v242 = vld [vmem:[%s2 + $0x10] sm:$0xf]
        %v243 = vld [vmem:[%s2 + $0x14] sm:$0xf]
        %v244 = vld [vmem:[%s2 + $0x18] sm:$0xf]
        %v245 = vld [vmem:[%s2 + $0x1c] sm:$0xf]
        %v246 = vld [vmem:[%s2 + $0x20] sm:$0xf]
        %v247 = vld [vmem:[%s2 + $0x24] sm:$0xf]
        %v248 = vld [vmem:[%s2 + $0x28] sm:$0xf]
        %v249 = vld [vmem:[%s2 + $0x2c] sm:$0xf]
        %v250 = vld [vmem:[%s2 + $0x30] sm:$0xf]
        %v251 = vld [vmem:[%s2 + $0x34] sm:$0xf]
        %v252 = vld [vmem:[%s2 + $0x38] sm:$0xf]
        %v253 = vld [vmem:[%s2 + $0x3c] sm:$0xf]
        %v270 = vunpack.c.l.b16 %v238
        %v271 = vunpack.c.l.b16 %v239
        %v272 = vunpack.c.l.b16 %v240
        %v273 = vunpack.c.l.b16 %v241
        %v274 = vunpack.c.l.b16 %v242
        %v275 = vunpack.c.l.b16 %v243
        %v276 = vunpack.c.l.b16 %v244
        %v277 = vunpack.c.l.b16 %v245
        %v278 = vunpack.c.l.b16 %v246
        %v279 = vunpack.c.l.b16 %v247
        %v280 = vunpack.c.l.b16 %v248
        %v281 = vunpack.c.l.b16 %v249
        %v282 = vunpack.c.l.b16 %v250
        %v283 = vunpack.c.l.b16 %v251
        %v284 = vunpack.c.l.b16 %v252
        %v285 = vunpack.c.l.b16 %v253
        %v286 = vpack.c.b16 %v271, %v270
        %v287 = vpack.c.b16 %v273, %v272
        %v288 = vpack.c.b16 %v275, %v274
        %v289 = vpack.c.b16 %v277, %v276
        %v290 = vpack.c.b16 %v279, %v278
        %v291 = vpack.c.b16 %v281, %v280
        %v292 = vpack.c.b16 %v283, %v282
        %v293 = vpack.c.b16 %v285, %v284
        %302 = vmatprep.subr.bf16.mxu0 0
        %303 = vmatpush1.bf16.msra.mxu0 %v286
        %304 = vmatprep.subr.bf16.mxu0 0
        %305 = vmatpush1.bf16.msra.mxu0 %v287
        %306 = vmatprep.subr.bf16.mxu0 0
        %307 = vmatpush1.bf16.msra.mxu0 %v288
        %308 = vmatprep.subr.bf16.mxu0 0
        %309 = vmatpush1.bf16.msra.mxu0 %v289
        %310 = vmatprep.subr.bf16.mxu0 0
        %311 = vmatpush1.bf16.msra.mxu0 %v290
        %312 = vmatprep.subr.bf16.mxu0 0
        %313 = vmatpush1.bf16.msra.mxu0 %v291
        %314 = vmatprep.subr.bf16.mxu0 0
        %315 = vmatpush1.bf16.msra.mxu0 %v292
        %316 = vmatprep.subr.bf16.mxu0 0
        %317 = vmatpush1.bf16.msra.mxu0 %v293
        %318 = vmatprep.subr.bf16.mxu0 0
        %319 = vmatpush1.bf16.msra.mxu0 0
        %320 = vmatprep.subr.bf16.mxu0 0
        %321 = vmatpush1.bf16.msra.mxu0 0
        %322 = vmatprep.subr.bf16.mxu0 0
        %323 = vmatpush1.bf16.msra.mxu0 0
        %324 = vmatprep.subr.bf16.mxu0 0
        %325 = vmatpush1.bf16.msra.mxu0 0
        %326 = vmatprep.subr.bf16.mxu0 0
        %327 = vmatpush1.bf16.msra.mxu0 0
        %328 = vmatprep.subr.bf16.mxu0 0
        %329 = vmatpush1.bf16.msra.mxu0 0
        %330 = vmatprep.subr.bf16.mxu0 0
        %331 = vmatpush1.bf16.msra.mxu0 0
        %332 = vmatprep.subr.bf16.mxu0 0
        %333 = vmatpush1.bf16.msra.mxu0 0
        %334 = vmatprep.mubr.bf16.mxu0 0
        %335 = vmatmul.mubr.bf16.gmra.mrb[0].mxu0 %v237
        %v336 = vpop.f32.mrb[0].mxu0
        %v337 = vadd.f32 0.0, %v336
        %v338 = vpop.f32.mrb[0].mxu0
        %v339 = vpop.f32.mrb[0].mxu0
        %v340 = vpop.f32.mrb[0].mxu0
        %341 = vdwg.mxu0
        %v342 = vmax.f32 %v337, 0.0
        %v343 = vmul.f32 %v342, 0.6
        %v344 = vmul.f32 %v175, 0.4
        %v345 = vadd.f32 %v343, %v344
        %346 = vst.msk [vmem:[%s161] sm:$0xff] %vm169, %v345
        %s347 = sand.u32 %s93, 1
        %s348 = scalar_lea.sflag [#allocation3], %s347
        %s349 = sand.u32 %s93, 1
        %s350 = smul.addr %s349, 8
        %s351 = scalar_lea.vmem [#allocation2], %s350
        // Predicated region
        $region33: #{tpu_custom_call.1} parent=31 // pred_check
          %p352 = pneg %p103
        $region34: #{tpu_custom_call.1} parent=31 // pred_check_branch
          %354 = sbr.rel (%p352) target = $region36
        $region35: #{tpu_custom_call.1} parent=31 // pred_region
          %s356 = ssub.s32 128, 128
          %357 = vsyncadd %s348, %s356
          %s358 = smul.addr %s17, 128
          %s359 = scalar_lea.hbm %s3, %s358
          %s361 = sshll.u32 %s351, 4
          %s362 = int_to_ptr.vmem [resolvable:$true] %s361
          %364 = dma.vmem_to_hbm [thread:$0]  %s362, 128, %s359, %s348
        $region36: #{tpu_custom_call.1} parent=31 // pred_fallthru
          _
      $region32: #{tpu_custom_call.1} parent=5 // pred_fallthru
        _
      %p365 = scmp.le.s32.totalorder 2, %s12
      // Predicated region
      $region37: #{tpu_custom_call.1} parent=5 // pred_check
        %p366 = pneg %p365
      $region38: #{tpu_custom_call.1} parent=5 // pred_check_branch
        %368 = sbr.rel (%p366) target = $region40
      $region39: #{tpu_custom_call.1} parent=5 // pred_region
        %s369 = ssub.s32 %s12, 2
        // Predicated region
        $region41: #{tpu_custom_call.1} parent=39 // pred_check
          %p370 = pneg %p109
        $region42: #{tpu_custom_call.1} parent=39 // pred_check_branch
          %372 = sbr.rel (%p370) target = $region44
        $region43: #{tpu_custom_call.1} parent=39 // pred_region
          %s373 = sand.u32 %s94, 1
          %s374 = scalar_lea.sflag [#allocation3], %s373
          %s375 = sand.u32 %s94, 1
          %s376 = smul.addr %s375, 8
          %s377 = scalar_lea.vmem [#allocation2], %s376
          %378 = dma.done %s374, 128
        $region44: #{tpu_custom_call.1} parent=39 // pred_fallthru
          _
      $region40: #{tpu_custom_call.1} parent=5 // pred_fallthru
        _
    $region6: #{tpu_custom_call.1} parent=1 // loop_footer
      %s16 = sadd.s32 1, %s12
    $region7: #{tpu_custom_call.1} parent=1 // loop_footer_branch
      %11 = sbr.rel target = $region3
    $region8: #{tpu_custom_call.1} parent=1 // loop_exit
      _
    %379 = vsyncpa [#allocation3], 1
    %s380 = scalar_lea.sflag [#allocation3], 1
    %381 = vsyncpa %s380, 1

</llo_original>
